<compile_context>
chip_gen: v5e
topology: v5e:2x2
jax: 0.10.0
libtpu: 0.0.40
codegen_flags: <defaults>
</compile_context>

<pallas_src>
import jax
import jax.numpy as jnp
from jax.experimental import pallas as pl
from jax.experimental.pallas import tpu as pltpu


# FATES / CLM constants referenced (as module globals) by the original module.
H2O_CO2_BL_DIFFUSE_RATIO = 1.4      # h2o_co2_bl_diffuse_ratio
H2O_CO2_STOMA_DIFFUSE_RATIO = 1.6   # h2o_co2_stoma_diffuse_ratio
INIT_A2L_CO2_C3 = 0.7               # PBM.get_guess: x_init = 0.7 * can_co2_ppress

# model_inputs fields produced by PBM.pre_fates() (per solver point).
_FIELD_NAMES = (
    "can_press", "can_co2_ppress", "can_o2_ppress", "gb_mol",
    "vcmax", "je", "lmr", "co2_cpoint", "mm_kco2", "mm_ko2",
    "bb_slope", "bb_intercept",
)
_NF = len(_FIELD_NAMES)
_LANE = 128


def _residual_ref(x, p):
    """Pure-JAX reference: exact nonlinearsolver.forward body (original math)."""
    ac = p["vcmax"] * (x - p["co2_cpoint"]) / (
        x + p["mm_kco2"] * (1.0 + p["can_o2_ppress"] / p["mm_ko2"]))
    aj = p["je"] * (x - p["co2_cpoint"]) / (4.0 * x + 8.0 * p["co2_cpoint"])
    anet = jnp.minimum(ac, aj) - p["lmr"]
    leaf_co2 = jnp.maximum(
        p["can_co2_ppress"]
        - H2O_CO2_BL_DIFFUSE_RATIO * anet * p["can_press"] / p["gb_mol"],
        1e-6)
    gs_mol = (p["bb_slope"] * jnp.maximum(anet, 0.0) * p["can_press"] / leaf_co2
              + p["bb_intercept"])
    can_co2_ppress = p["can_co2_ppress"]
    f = x - (can_co2_ppress
             - anet * p["can_press"]
             * (H2O_CO2_BL_DIFFUSE_RATIO * gs_mol
                + H2O_CO2_STOMA_DIFFUSE_RATIO * p["gb_mol"])
             / (p["gb_mol"] * gs_mol))
    x_init = INIT_A2L_CO2_C3 * can_co2_ppress        # PBM.get_guess(model_inputs)
    return jnp.where(anet < 0.0, x - x_init, f)


def _nonlinearsolver_kernel(x_ref, p_ref, f_ref):
    x = x_ref[...]                                   # [tr, 128] f32
    p = p_ref[...].astype(jnp.float32)               # [12, tr, 128] (bf16 -> f32 upcast is free)

    can_press      = p[0]
    can_co2_ppress = p[1]
    can_o2_ppress  = p[2]
    gb_mol         = p[3]
    vcmax          = p[4]
    je             = p[5]
    lmr            = p[6]
    co2_cpoint     = p[7]
    mm_kco2        = p[8]
    mm_ko2         = p[9]
    bb_slope       = p[10]
    bb_intercept   = p[11]

    # --- PBM.forward_model surrogate: C3 Farquhar assimilation + Ball-Berry gs.
    x_minus_cp = x - co2_cpoint
    ac = vcmax * x_minus_cp / (x + mm_kco2 * (1.0 + can_o2_ppress / mm_ko2))
    aj = je * x_minus_cp / (4.0 * x + 8.0 * co2_cpoint)
    anet = jnp.minimum(ac, aj) - lmr

    inv_gb = 1.0 / gb_mol                            # hoisted; reused twice
    a_cp = anet * can_press
    a_cp_inv_gb = a_cp * inv_gb                      # reused (leaf_co2 + residual)
    leaf_co2 = jnp.maximum(
        can_co2_ppress - H2O_CO2_BL_DIFFUSE_RATIO * a_cp_inv_gb, 1e-6)
    gs_mol = (bb_slope * jnp.maximum(anet, 0.0) * can_press / leaf_co2
              + bb_intercept)
    inv_gs = 1.0 / gs_mol

    # --- residual: (1.4*gs + 1.6*gb)/(gb*gs) == 1.4/gb + 1.6/gs (one divide saved)
    f = (x - can_co2_ppress
         + H2O_CO2_BL_DIFFUSE_RATIO * a_cp_inv_gb
         + H2O_CO2_STOMA_DIFFUSE_RATIO * a_cp * inv_gs)
    x_init = INIT_A2L_CO2_C3 * can_co2_ppress        # PBM.get_guess(model_inputs)
    f_ref[...] = jnp.where(anet < 0.0, x - x_init, f)


def _flatten_pad(a, rows, fill):
    """Flatten to 1-D f32, pad to rows*LANE, reshape lane-dense [rows, 128]."""
    flat = jnp.asarray(a, jnp.float32).reshape(-1)
    pad = rows * _LANE - flat.shape[0]
    if pad:
        flat = jnp.concatenate([flat, jnp.full((pad,), fill, jnp.float32)])
    return flat.reshape(rows, _LANE)


def nonlinearsolver_pallas(x, model_inputs, *, param_dtype=jnp.float32,
                           vmem_budget_bytes=32 * 1024 * 1024):
    """Pallas equivalent of nonlinearsolver(PBM).forward(x).

    x and every model_inputs field share one shape (any rank). The wrapper
    flattens everything to a lane-dense [rows, 128] layout, packs the 12
    parameter fields into a single [12, rows, 128] array, and tiles rows over
    a 1-D "parallel" grid with the block size derived from a VMEM budget.
    """
    orig_shape = x.shape
    n = x.size
    param_bytes = jnp.dtype(param_dtype).itemsize
    sublane = 8 if param_bytes >= 4 else 16          # bf16 packs 2 rows / sublane

    # Double-buffered per-step footprint: x + f (f32) + packed params.
    per_row_bytes = 2 * _LANE * (4 + 4 + _NF * param_bytes)
    tr = max(sublane, (vmem_budget_bytes // per_row_bytes) // sublane * sublane)

    rows_raw = pl.cdiv(n, _LANE)
    tr = min(tr, pl.cdiv(rows_raw, sublane) * sublane)   # don't exceed the data
    if rows_raw > sublane:
        # >= 2 grid steps so v7x's two TensorCores both get work.
        half = pl.cdiv(pl.cdiv(rows_raw, 2), sublane) * sublane
        tr = min(tr, half)
    rows = pl.cdiv(rows_raw, tr) * tr                # pad to a whole grid
    grid = (rows // tr,)

    x2 = _flatten_pad(x, rows, 0.0)
    # Pack the 12 model_inputs fields into one array -> 3 DMA streams/step
    # instead of 14. Pad fill=1.0 keeps the (discarded) padded lanes finite.
    params = jnp.stack(
        [_flatten_pad(model_inputs[name], rows, 1.0) for name in _FIELD_NAMES]
    ).astype(param_dtype)

    x_spec = pl.BlockSpec((tr, _LANE), lambda i: (i, 0),
                          memory_space=pltpu.MemorySpace.VMEM)
    p_spec = pl.BlockSpec((_NF, tr, _LANE), lambda i: (0, i, 0),
                          memory_space=pltpu.MemorySpace.VMEM)

    bytes_per_step = 2 * tr * _LANE * (4 + 4 + _NF * param_bytes)
    vmem_limit = int(max(16 * 1024 * 1024,
                         min(48 * 1024 * 1024, bytes_per_step + (4 << 20))))

    n_pad = rows * _LANE
    cost = pl.CostEstimate(
        flops=40 * n_pad,                            # ~25 VPU ops + 4 NR divides
        transcendentals=0,                           # divides are VALU sequences
        bytes_accessed=n_pad * (4 + 4 + _NF * param_bytes),
    )

    f2 = pl.pallas_call(
        _nonlinearsolver_kernel,
        out_shape=jax.ShapeDtypeStruct((rows, _LANE), jnp.float32),
        grid=grid,
        in_specs=[x_spec, p_spec],
        out_specs=x_spec,
        compiler_params=pltpu.CompilerParams(
            dimension_semantics=("parallel",),
            vmem_limit_bytes=vmem_limit),
        cost_estimate=cost,
    )(x2, params)

    return f2.reshape(-1)[:n].reshape(orig_shape)


if __name__ == "__main__":
    key = jax.random.PRNGKey(0)
    R, L = 32, 128                 # 4096 independent solver points (small demo)
    ks = jax.random.split(key, 1 + _NF)

    def u(k, lo, hi):
        return jax.random.uniform(k, (R, L), jnp.float32, lo, hi)

    # x: current guess of intercellular CO2 partial pressure [Pa]
    x = u(ks[0], 10.0, 60.0)

    # model_inputs = PBM.pre_fates(): per-point environment / physiology fields
    ranges = {
        "can_press":      (9.0e4, 1.01325e5),    # canopy air pressure [Pa]
        "can_co2_ppress": (30.0, 45.0),           # canopy CO2 partial pressure [Pa]
        "can_o2_ppress":  (2.0e4, 2.1e4),         # O2 partial pressure [Pa]
        "gb_mol":         (1.0e6, 3.0e6),         # boundary-layer conductance
        "vcmax":          (20.0, 80.0),           # max carboxylation rate
        "je":             (30.0, 150.0),          # electron transport rate
        "lmr":            (0.5, 6.0),             # leaf maintenance respiration
        "co2_cpoint":     (3.0, 5.0),             # CO2 compensation point [Pa]
        "mm_kco2":        (30.0, 45.0),           # Michaelis-Menten K, CO2 [Pa]
        "mm_ko2":         (2.5e4, 3.0e4),         # Michaelis-Menten K, O2 [Pa]
        "bb_slope":       (6.0, 10.0),            # Ball-Berry slope
        "bb_intercept":   (5.0e3, 2.0e4),         # Ball-Berry intercept
    }
    model_inputs = {name: u(k, *ranges[name])
                    for name, k in zip(_FIELD_NAMES, ks[1:])}

    # 1) f32 parameter streams: exact module semantics.
    f = jax.block_until_ready(nonlinearsolver_pallas(x, model_inputs))
    f_ref = _residual_ref(x, model_inputs)
    assert f.shape == x.shape
    assert jnp.allclose(f, f_ref, rtol=1e-4, atol=1e-2), "f32 mismatch vs reference"

    # 2) bf16 parameter streams (HBM-bandwidth optimization); validated against
    #    the same math evaluated with the bf16-rounded parameters.
    f_bf = jax.block_until_ready(
        nonlinearsolver_pallas(x, model_inputs, param_dtype=jnp.bfloat16))
    p_bf = {k: v.astype(jnp.bfloat16).astype(jnp.float32)
            for k, v in model_inputs.items()}
    f_bf_ref = _residual_ref(x, p_bf)
    assert jnp.allclose(f_bf, f_bf_ref, rtol=1e-3, atol=1e-2), "bf16 mismatch vs reference"

    print("KERNEL_OK")
</pallas_src>

<mosaic_0001>
module attributes {stable_mosaic.version = 11 : i64} {
  func.func @_nonlinearsolver_kernel(%arg0: i32, %arg1: memref<16x128xf32, #tpu.memory_space<vmem>>, %arg2: memref<12x16x128xf32, #tpu.memory_space<vmem>>, %arg3: memref<16x128xf32, #tpu.memory_space<vmem>>) attributes {dimension_semantics = [#tpu.dimension_semantics<parallel>], iteration_bounds = array<i64: 2>, scalar_prefetch = 0 : i64, scratch_operands = 0 : i64, tpu.core_type = #tpu.core_type<tc>, window_params = [{transform_indices = @transform_0, window_bounds = array<i64: 16, 128>}, {transform_indices = @transform_1, window_bounds = array<i64: 12, 16, 128>}, {transform_indices = @transform_2, window_bounds = array<i64: 16, 128>}]} {
    %c0 = arith.constant 0 : index
    %c0_0 = arith.constant 0 : index
    %0 = vector.load %arg1[%c0, %c0_0] : memref<16x128xf32, #tpu.memory_space<vmem>>, vector<16x128xf32>
    %c0_1 = arith.constant 0 : index
    %c0_2 = arith.constant 0 : index
    %c0_3 = arith.constant 0 : index
    %1 = vector.load %arg2[%c0_1, %c0_2, %c0_3] : memref<12x16x128xf32, #tpu.memory_space<vmem>>, vector<12x16x128xf32>
    %2 = vector.extract_strided_slice %1 {offsets = [0, 0, 0], sizes = [1, 16, 128], strides = [1, 1, 1]} : vector<12x16x128xf32> to vector<1x16x128xf32>
    %3 = vector.shape_cast %2 : vector<1x16x128xf32> to vector<16x128xf32>
    %4 = vector.extract_strided_slice %1 {offsets = [1, 0, 0], sizes = [1, 16, 128], strides = [1, 1, 1]} : vector<12x16x128xf32> to vector<1x16x128xf32>
    %5 = vector.shape_cast %4 : vector<1x16x128xf32> to vector<16x128xf32>
    %6 = vector.extract_strided_slice %1 {offsets = [2, 0, 0], sizes = [1, 16, 128], strides = [1, 1, 1]} : vector<12x16x128xf32> to vector<1x16x128xf32>
    %7 = vector.shape_cast %6 : vector<1x16x128xf32> to vector<16x128xf32>
    %8 = vector.extract_strided_slice %1 {offsets = [3, 0, 0], sizes = [1, 16, 128], strides = [1, 1, 1]} : vector<12x16x128xf32> to vector<1x16x128xf32>
    %9 = vector.shape_cast %8 : vector<1x16x128xf32> to vector<16x128xf32>
    %10 = vector.extract_strided_slice %1 {offsets = [4, 0, 0], sizes = [1, 16, 128], strides = [1, 1, 1]} : vector<12x16x128xf32> to vector<1x16x128xf32>
    %11 = vector.shape_cast %10 : vector<1x16x128xf32> to vector<16x128xf32>
    %12 = vector.extract_strided_slice %1 {offsets = [5, 0, 0], sizes = [1, 16, 128], strides = [1, 1, 1]} : vector<12x16x128xf32> to vector<1x16x128xf32>
    %13 = vector.shape_cast %12 : vector<1x16x128xf32> to vector<16x128xf32>
    %14 = vector.extract_strided_slice %1 {offsets = [6, 0, 0], sizes = [1, 16, 128], strides = [1, 1, 1]} : vector<12x16x128xf32> to vector<1x16x128xf32>
    %15 = vector.shape_cast %14 : vector<1x16x128xf32> to vector<16x128xf32>
    %16 = vector.extract_strided_slice %1 {offsets = [7, 0, 0], sizes = [1, 16, 128], strides = [1, 1, 1]} : vector<12x16x128xf32> to vector<1x16x128xf32>
    %17 = vector.shape_cast %16 : vector<1x16x128xf32> to vector<16x128xf32>
    %18 = vector.extract_strided_slice %1 {offsets = [8, 0, 0], sizes = [1, 16, 128], strides = [1, 1, 1]} : vector<12x16x128xf32> to vector<1x16x128xf32>
    %19 = vector.shape_cast %18 : vector<1x16x128xf32> to vector<16x128xf32>
    %20 = vector.extract_strided_slice %1 {offsets = [9, 0, 0], sizes = [1, 16, 128], strides = [1, 1, 1]} : vector<12x16x128xf32> to vector<1x16x128xf32>
    %21 = vector.shape_cast %20 : vector<1x16x128xf32> to vector<16x128xf32>
    %22 = vector.extract_strided_slice %1 {offsets = [10, 0, 0], sizes = [1, 16, 128], strides = [1, 1, 1]} : vector<12x16x128xf32> to vector<1x16x128xf32>
    %23 = vector.shape_cast %22 : vector<1x16x128xf32> to vector<16x128xf32>
    %24 = vector.extract_strided_slice %1 {offsets = [11, 0, 0], sizes = [1, 16, 128], strides = [1, 1, 1]} : vector<12x16x128xf32> to vector<1x16x128xf32>
    %25 = vector.shape_cast %24 : vector<1x16x128xf32> to vector<16x128xf32>
    %26 = arith.subf %0, %17 : vector<16x128xf32>
    %27 = arith.mulf %11, %26 : vector<16x128xf32>
    %28 = arith.divf %7, %21 : vector<16x128xf32>
    %cst = arith.constant 1.000000e+00 : f32
    %29 = vector.broadcast %cst : f32 to vector<16x128xf32>
    %30 = arith.addf %29, %28 : vector<16x128xf32>
    %31 = arith.mulf %19, %30 : vector<16x128xf32>
    %32 = arith.addf %0, %31 : vector<16x128xf32>
    %33 = arith.divf %27, %32 : vector<16x128xf32>
    %34 = arith.mulf %13, %26 : vector<16x128xf32>
    %cst_4 = arith.constant 4.000000e+00 : f32
    %35 = vector.broadcast %cst_4 : f32 to vector<16x128xf32>
    %36 = arith.mulf %35, %0 : vector<16x128xf32>
    %cst_5 = arith.constant 8.000000e+00 : f32
    %37 = vector.broadcast %cst_5 : f32 to vector<16x128xf32>
    %38 = arith.mulf %37, %17 : vector<16x128xf32>
    %39 = arith.addf %36, %38 : vector<16x128xf32>
    %40 = arith.divf %34, %39 : vector<16x128xf32>
    %41 = arith.minimumf %33, %40 : vector<16x128xf32>
    %42 = arith.subf %41, %15 : vector<16x128xf32>
    %cst_6 = arith.constant 1.000000e+00 : f32
    %43 = vector.broadcast %cst_6 : f32 to vector<16x128xf32>
    %44 = arith.divf %43, %9 : vector<16x128xf32>
    %45 = arith.mulf %42, %3 : vector<16x128xf32>
    %46 = arith.mulf %45, %44 : vector<16x128xf32>
    %cst_7 = arith.constant 1.400000e+00 : f32
    %47 = vector.broadcast %cst_7 : f32 to vector<16x128xf32>
    %48 = arith.mulf %47, %46 : vector<16x128xf32>
    %49 = arith.subf %5, %48 : vector<16x128xf32>
    %cst_8 = arith.constant 9.99999997E-7 : f32
    %50 = vector.broadcast %cst_8 : f32 to vector<16x128xf32>
    %51 = arith.maximumf %49, %50 : vector<16x128xf32>
    %cst_9 = arith.constant 0.000000e+00 : f32
    %52 = vector.broadcast %cst_9 : f32 to vector<16x128xf32>
    %53 = arith.maximumf %42, %52 : vector<16x128xf32>
    %54 = arith.mulf %23, %53 : vector<16x128xf32>
    %55 = arith.mulf %54, %3 : vector<16x128xf32>
    %56 = arith.divf %55, %51 : vector<16x128xf32>
    %57 = arith.addf %56, %25 : vector<16x128xf32>
    %cst_10 = arith.constant 1.000000e+00 : f32
    %58 = vector.broadcast %cst_10 : f32 to vector<16x128xf32>
    %59 = arith.divf %58, %57 : vector<16x128xf32>
    %60 = arith.subf %0, %5 : vector<16x128xf32>
    %cst_11 = arith.constant 1.400000e+00 : f32
    %61 = vector.broadcast %cst_11 : f32 to vector<16x128xf32>
    %62 = arith.mulf %61, %46 : vector<16x128xf32>
    %63 = arith.addf %60, %62 : vector<16x128xf32>
    %cst_12 = arith.constant 1.600000e+00 : f32
    %64 = vector.broadcast %cst_12 : f32 to vector<16x128xf32>
    %65 = arith.mulf %64, %45 : vector<16x128xf32>
    %66 = arith.mulf %65, %59 : vector<16x128xf32>
    %67 = arith.addf %63, %66 : vector<16x128xf32>
    %cst_13 = arith.constant 0.699999988 : f32
    %68 = vector.broadcast %cst_13 : f32 to vector<16x128xf32>
    %69 = arith.mulf %68, %5 : vector<16x128xf32>
    %cst_14 = arith.constant 0.000000e+00 : f32
    %70 = vector.broadcast %cst_14 : f32 to vector<16x128xf32>
    %71 = arith.cmpf olt, %42, %70 : vector<16x128xf32>
    %72 = arith.subf %0, %69 : vector<16x128xf32>
    %73 = arith.select %71, %72, %67 : vector<16x128xi1>, vector<16x128xf32>
    %c0_15 = arith.constant 0 : index
    %c0_16 = arith.constant 0 : index
    %74 = vector.load %arg3[%c0_15, %c0_16] : memref<16x128xf32, #tpu.memory_space<vmem>>, vector<16x128xf32>
    tpu.vector_store %arg3[%c0_15, %c0_16], %73 {strides = array<i32>} : memref<16x128xf32, #tpu.memory_space<vmem>>, vector<16x128xf32>,
    return
  }
  func.func @transform_0(%arg0: i32) -> (i32, i32) {
    %c0_i32 = arith.constant 0 : i32
    %c0_i32_0 = arith.constant 0 : i32
    return %arg0, %c0_i32 : i32, i32
  }
  func.func @transform_1(%arg0: i32) -> (i32, i32, i32) {
    %c0_i32 = arith.constant 0 : i32
    %c0_i32_0 = arith.constant 0 : i32
    %c0_i32_1 = arith.constant 0 : i32
    return %c0_i32, %arg0, %c0_i32_0 : i32, i32, i32
  }
  func.func @transform_2(%arg0: i32) -> (i32, i32) {
    %c0_i32 = arith.constant 0 : i32
    %c0_i32_0 = arith.constant 0 : i32
    return %arg0, %c0_i32 : i32, i32
  }
}

</mosaic_0001>

<llo_original>
// kernel: tpu_custom_call.1
$region0: #{tpu_custom_call.1}
  #allocation0 [shape = 'u32[]', space=smem, size = 0x4, offset = 0x4, fixed_abs, tag = 'smem constant byte address 0x4 - core index']
  #allocation1 [shape = 'u32[72,128]{1,0:T(1,128)}', space=vmem, size = 0x9000, scoped, tag = 'internal scratch']
  #allocation8 [shape = 's32[]', space=sflag, size = 0x4, offset = 0, fixed_abs, tag = 'sflag constant byte address 0x0 - dummy sync flag']
  %s0 = inlined_call_operand.hbm [shape: f32[32,128], index: 0, kind: input, shape index: {}]
  %s1 = inlined_call_operand.hbm [shape: f32[12,32,128], index: 1, kind: input, shape index: {}]
  %s2 = inlined_call_operand.hbm [shape: f32[32,128], index: 2, kind: output, shape index: {}]
  %s3 = sld [smem:[#allocation0]]
  $region49: #{tpu_custom_call.1} parent=0
    _
  %s5 = ssub.s32 1, %s3
  %s6 = scalar_select 0, %s5, %s3
  $region1: #{tpu_custom_call.1} parent=0
    #allocation2 [shape = 'u8[16384]{0}', space=vmem, size = 0x4000, scoped, tag = 'input window, operand 0']
    #allocation3 [shape = 's32[2]{0}', space=sflag, size = 0x8, scoped, tag = 'scoped memory for tpu_custom_call.1']
    #allocation4 [shape = 's32[2]{0}', space=sflag, size = 0x8, scoped, tag = 'scoped memory for tpu_custom_call.1']
    #allocation5 [shape = 'u8[196608]{0}', space=vmem, size = 0x30000, scoped, tag = 'input window, operand 1']
    #allocation6 [shape = 's32[2]{0}', space=sflag, size = 0x8, scoped, tag = 'scoped memory for tpu_custom_call.1']
    #allocation7 [shape = 'u8[16384]{0}', space=vmem, size = 0x4000, scoped, tag = 'output window, operand 0']
    %7 = vsyncpa [#allocation3], 0
    %s8 = scalar_lea.sflag [#allocation3], 1
    %9 = vsyncpa %s8, 0
    %10 = vsyncpa [#allocation6], 0
    %s11 = scalar_lea.sflag [#allocation6], 1
    %12 = vsyncpa %s11, 0
    %13 = vsyncpa [#allocation4], 0
    %s14 = scalar_lea.sflag [#allocation4], 1
    %15 = vsyncpa %s14, 0
    loop: start=0, step=1, limit=4
    $region2: #{tpu_custom_call.1} parent=1 // loop_pre_header
      _
    $region3: #{tpu_custom_call.1} parent=1 // loop_header
      %s17 = sphi 0, %s21
      %p18 = scmp.ge.s32.totalorder %s17, 4
      %s27 = sphi 0, %s29
      %s30 = sphi 0, %s27
      %s31 = sphi 0, %s30
      %s47 = sphi 0, %s31
      %s53 = sphi 0, %s55
      %s56 = sphi 0, %s53
      %s57 = sphi 0, %s56
      %s73 = sphi 0, %s57
      %s79 = sphi 0, %s81
      %s82 = sphi 0, %s79
      %s83 = sphi 0, %s82
      %s99 = sphi 0, %s83
    $region4: #{tpu_custom_call.1} parent=1 // loop_header_branch
      %20 = sbr.rel (%p18) target = $region8
    $region5: #{tpu_custom_call.1} parent=1 // loop_body
      %s22 = ssub.s32 %s17, 1
      %s23 = ssub.s32 %s17, 2
      %s24 = sadd.s32 %s17, 1
      %s25 = ssub.s32 %s17, %s24
      %p26 = scmp.eq.s32.totalorder %s25, 0
      %s28 = sadd.s32 %s27, 1
      %s29 = scalar_select %p26, %s27, %s28
      %p32 = pneg %p26
      %p33 = scmp.eq.s32.totalorder %s17, 1
      %p34 = por %p32, %p33
      %p35 = scmp.ne.s32.totalorder %s27, %s30
      %p36 = scmp.eq.s32.totalorder %s17, 0
      %p37 = por %p35, %p36
      %p38 = scmp.ne.s32.totalorder %s27, %s30
      %p39 = scmp.eq.s32.totalorder %s22, 1
      %p40 = por %p38, %p39
      %p41 = scmp.ne.s32.totalorder %s30, %s31
      %p42 = scmp.eq.s32.totalorder %s22, 0
      %p43 = por %p41, %p42
      %p44 = scmp.ne.s32.totalorder %s30, %s31
      %p45 = scmp.eq.s32.totalorder %s23, 1
      %p46 = por %p44, %p45
      %p48 = scmp.ne.s32.totalorder %s31, %s47
      %p49 = scmp.eq.s32.totalorder %s23, 0
      %p50 = por %p48, %p49
      %s51 = ssub.s32 %s17, %s24
      %p52 = scmp.eq.s32.totalorder %s51, 0
      %s54 = sadd.s32 %s53, 1
      %s55 = scalar_select %p52, %s53, %s54
      %p58 = pneg %p52
      %p59 = scmp.eq.s32.totalorder %s17, 1
      %p60 = por %p58, %p59
      %p61 = scmp.ne.s32.totalorder %s53, %s56
      %p62 = scmp.eq.s32.totalorder %s17, 0
      %p63 = por %p61, %p62
      %p64 = scmp.ne.s32.totalorder %s53, %s56
      %p65 = scmp.eq.s32.totalorder %s22, 1
      %p66 = por %p64, %p65
      %p67 = scmp.ne.s32.totalorder %s56, %s57
      %p68 = scmp.eq.s32.totalorder %s22, 0
      %p69 = por %p67, %p68
      %p70 = scmp.ne.s32.totalorder %s56, %s57
      %p71 = scmp.eq.s32.totalorder %s23, 1
      %p72 = por %p70, %p71
      %p74 = scmp.ne.s32.totalorder %s57, %s73
      %p75 = scmp.eq.s32.totalorder %s23, 0
      %p76 = por %p74, %p75
      %s77 = ssub.s32 %s17, %s24
      %p78 = scmp.eq.s32.totalorder %s77, 0
      %s80 = sadd.s32 %s79, 1
      %s81 = scalar_select %p78, %s79, %s80
      %p84 = pneg %p78
      %p85 = scmp.eq.s32.totalorder %s17, 1
      %p86 = por %p84, %p85
      %p87 = scmp.ne.s32.totalorder %s79, %s82
      %p88 = scmp.eq.s32.totalorder %s17, 0
      %p89 = por %p87, %p88
      %p90 = scmp.ne.s32.totalorder %s79, %s82
      %p91 = scmp.eq.s32.totalorder %s22, 1
      %p92 = por %p90, %p91
      %p93 = scmp.ne.s32.totalorder %s82, %s83
      %p94 = scmp.eq.s32.totalorder %s22, 0
      %p95 = por %p93, %p94
      %p96 = scmp.ne.s32.totalorder %s82, %s83
      %p97 = scmp.eq.s32.totalorder %s23, 1
      %p98 = por %p96, %p97
      %p100 = scmp.ne.s32.totalorder %s83, %s99
      %p101 = scmp.eq.s32.totalorder %s23, 0
      %p102 = por %p100, %p101
      %p103 = scmp.le.s32.totalorder 1, %s17
      %p104 = scmp.lt.s32.totalorder %s17, 3
      %p105 = pnand %p103, %p104
      %p106 = pneg %p105
      // Predicated region
      $region9: #{tpu_custom_call.1} parent=5 // pred_check
        _
      $region10: #{tpu_custom_call.1} parent=5 // pred_check_branch
        %108 = sbr.rel (%p105) target = $region12
      $region11: #{tpu_custom_call.1} parent=5 // pred_region
        %s109 = ssub.s32 %s17, 1
      $region12: #{tpu_custom_call.1} parent=5 // pred_fallthru
        _
      %p110 = scmp.lt.s32.totalorder %s17, 2
      // Predicated region
      $region13: #{tpu_custom_call.1} parent=5 // pred_check
        %p111 = pneg %p110
      $region14: #{tpu_custom_call.1} parent=5 // pred_check_branch
        %113 = sbr.rel (%p111) target = $region16
      $region15: #{tpu_custom_call.1} parent=5 // pred_region
        // Predicated region
        $region17: #{tpu_custom_call.1} parent=15 // pred_check
          %p114 = pneg %p37
        $region18: #{tpu_custom_call.1} parent=15 // pred_check_branch
          %116 = sbr.rel (%p114) target = $region20
        $region19: #{tpu_custom_call.1} parent=15 // pred_region
          %s117 = sand.u32 %s27, 1
          %s118 = scalar_lea.sflag [#allocation3], %s117
          %s119 = sand.u32 %s27, 1
          %s120 = smul.addr %s119, 16
          %s121 = scalar_lea.vmem [#allocation2], %s120
          %s122 = smul.u32 2, %s17
          %124 = vsyncadd %s118, 0
          %s125 = smul.addr %s122, 8
          %s126 = scalar_lea.hbm %s0, %s125
          %s127 = sshll.u32 %s126, 4
          %s128 = int_to_ptr.hbm [resolvable:$true] %s127
          %s129 = sshll.u32 %s121, 4
          %s130 = int_to_ptr.vmem [resolvable:$true] %s129
          %135 = dma.hbm_to_vmem [thread:$0]  %s128, 256, %s130, %s118, 128, 128, 8
        $region20: #{tpu_custom_call.1} parent=15 // pred_fallthru
          _
        // Predicated region
        $region21: #{tpu_custom_call.1} parent=15 // pred_check
          %p136 = pneg %p63
        $region22: #{tpu_custom_call.1} parent=15 // pred_check_branch
          %138 = sbr.rel (%p136) target = $region24
        $region23: #{tpu_custom_call.1} parent=15 // pred_region
          #allocation9 [shape = 'u32[6]{0}', space=smem, size = 0x18, scoped, tag = 'DMA stride descriptor']
          %s139 = sand.u32 %s53, 1
          %s140 = scalar_lea.sflag [#allocation6], %s139
          %s141 = sand.u32 %s53, 1
          %s142 = smul.addr %s141, 192
          %s143 = scalar_lea.vmem [#allocation5], %s142
          %s144 = smul.u32 2, %s17
          %146 = vsyncadd %s140, 0
          %s147 = smul.addr %s144, 8
          %s148 = scalar_lea.hbm %s1, %s147
          %s150 = sshll.u32 1, 14
          %s151 = sxor.u32 4294967295, %s150
          %s153 = sld [smem:[#allocation0]]
          %s154 = sadd.s32 2, %s153
          %s156 = sshll.u32 7, 26
          %s157 = sxor.u32 4294967295, %s156
          %s158 = sand.u32 0, %s157
          %s159 = sshll.u32 %s154, 26
          %s160 = sor.u32 %s158, %s159
          %s161 = sshll.u32 %s148, 4
          %s162 = int_to_ptr.hbm [resolvable:$true] %s161
          %s163 = sshll.u32 %s143, 4
          %s164 = int_to_ptr.vmem [resolvable:$true] %s163
          %170 = sst [smem:[#allocation9]] 512
          %s171 = scalar_lea.smem [#allocation9], 1
          %172 = sst [smem:[%s171]] 256
          %s173 = scalar_lea.smem [#allocation9], 2
          %174 = sst [smem:[%s173]] 2
          %s175 = scalar_lea.smem [#allocation9], 3
          %176 = sst [smem:[%s175]] 128
          %s177 = scalar_lea.smem [#allocation9], 4
          %178 = sst [smem:[%s177]] 128
          %s179 = scalar_lea.smem [#allocation9], 5
          %180 = sst [smem:[%s179]] 8
          %182 = dma.general %s162, 3072, %s164, %s140, [#allocation8], [#allocation9], %s160, 0
        $region24: #{tpu_custom_call.1} parent=15 // pred_fallthru
          _
      $region16: #{tpu_custom_call.1} parent=5 // pred_fallthru
        _
      %p183 = scmp.le.s32.totalorder 1, %s17
      %p184 = scmp.lt.s32.totalorder %s17, 3
      %p185 = pnand %p183, %p184
      %p186 = pneg %p185
      // Predicated region
      $region25: #{tpu_custom_call.1} parent=5 // pred_check
        _
      $region26: #{tpu_custom_call.1} parent=5 // pred_check_branch
        %188 = sbr.rel (%p185) target = $region28
      $region27: #{tpu_custom_call.1} parent=5 // pred_region
        %s189 = ssub.s32 %s17, 1
        %s190 = sand.u32 %s30, 1
        %s191 = scalar_lea.sflag [#allocation3], %s190
        %s192 = sand.u32 %s30, 1
        %s193 = smul.addr %s192, 16
        %s194 = scalar_lea.vmem [#allocation2], %s193
        // Predicated region
        $region29: #{tpu_custom_call.1} parent=27 // pred_check
          %p195 = pneg %p43
        $region30: #{tpu_custom_call.1} parent=27 // pred_check_branch
          %197 = sbr.rel (%p195) target = $region32
        $region31: #{tpu_custom_call.1} parent=27 // pred_region
          %199 = dma.done %s191, 256
        $region32: #{tpu_custom_call.1} parent=27 // pred_fallthru
          _
        %s200 = sand.u32 %s56, 1
        %s201 = scalar_lea.sflag [#allocation6], %s200
        %s202 = sand.u32 %s56, 1
        %s203 = smul.addr %s202, 192
        %s204 = scalar_lea.vmem [#allocation5], %s203
        // Predicated region
        $region33: #{tpu_custom_call.1} parent=27 // pred_check
          %p205 = pneg %p69
        $region34: #{tpu_custom_call.1} parent=27 // pred_check_branch
          %207 = sbr.rel (%p205) target = $region36
        $region35: #{tpu_custom_call.1} parent=27 // pred_region
          %209 = dma.done %s201, 3072
        $region36: #{tpu_custom_call.1} parent=27 // pred_fallthru
          _
        %s210 = sand.u32 %s30, 1
        %s211 = scalar_lea.sflag [#allocation3], %s210
        %s212 = sand.u32 %s30, 1
        %s213 = smul.addr %s212, 16
        %s214 = scalar_lea.vmem [#allocation2], %s213
        %p215 = pneg %p43
        %p216 = pneg %p40
        %s217 = sand.u32 %s56, 1
        %s218 = scalar_lea.sflag [#allocation6], %s217
        %s219 = sand.u32 %s56, 1
        %s220 = smul.addr %s219, 192
        %s221 = scalar_lea.vmem [#allocation5], %s220
        %p222 = pneg %p69
        %p223 = pneg %p66
        %p224 = pneg %p95
        %p225 = pneg %p92
        %s226 = sand.u32 %s82, 1
        %s227 = scalar_lea.sflag [#allocation4], %s226
        %s228 = sand.u32 %s82, 1
        %s229 = smul.addr %s228, 16
        %s230 = scalar_lea.vmem [#allocation7], %s229
        %s231 = smul.u32 2, %s22
        %s232 = smul.u32 2, %s22
        %s233 = smul.u32 2, %s22
        %v234 = vld [vmem:[%s194] sm:$0xff]
        %v235 = vld [vmem:[%s194 + $0x8] sm:$0xff]
        %v236 = vld [vmem:[%s204] sm:$0xff]
        %v237 = vld [vmem:[%s204 + $0x8] sm:$0xff]
        %v238 = vld [vmem:[%s204 + $0x10] sm:$0xff]
        %v239 = vld [vmem:[%s204 + $0x18] sm:$0xff]
        %v240 = vld [vmem:[%s204 + $0x20] sm:$0xff]
        %v241 = vld [vmem:[%s204 + $0x28] sm:$0xff]
        %v242 = vld [vmem:[%s204 + $0x30] sm:$0xff]
        %v243 = vld [vmem:[%s204 + $0x38] sm:$0xff]
        %v244 = vld [vmem:[%s204 + $0x40] sm:$0xff]
        %v245 = vld [vmem:[%s204 + $0x48] sm:$0xff]
        %v246 = vld [vmem:[%s204 + $0x50] sm:$0xff]
        %v247 = vld [vmem:[%s204 + $0x58] sm:$0xff]
        %v248 = vld [vmem:[%s204 + $0x60] sm:$0xff]
        %v249 = vld [vmem:[%s204 + $0x68] sm:$0xff]
        %v250 = vld [vmem:[%s204 + $0x70] sm:$0xff]
        %v251 = vld [vmem:[%s204 + $0x78] sm:$0xff]
        %v252 = vld [vmem:[%s204 + $0x80] sm:$0xff]
        %v253 = vld [vmem:[%s204 + $0x88] sm:$0xff]
        %v254 = vld [vmem:[%s204 + $0x90] sm:$0xff]
        %v255 = vld [vmem:[%s204 + $0x98] sm:$0xff]
        %v256 = vld [vmem:[%s204 + $0xa0] sm:$0xff]
        %v257 = vld [vmem:[%s204 + $0xa8] sm:$0xff]
        %v258 = vld [vmem:[%s204 + $0xb0] sm:$0xff]
        %v259 = vld [vmem:[%s204 + $0xb8] sm:$0xff]
        %v260 = vsub.f32 %v234, %v250
        %v261 = vsub.f32 %v235, %v251
        %v262 = vmul.f32 %v244, %v260
        %v263 = vmul.f32 %v245, %v261
        %v264 = vrcp.pop %v254
        %v265 = vmul.f32 %v254, %v264
        %v266 = vsub.f32 1.0, %v265
        %v267 = vmul.f32 %v264, %v266
        %v268 = vadd.f32 %v264, %v267
        %vm269 = vweird.f32 %v254
        %vm270 = vweird.f32 %v264
        %vm271 = vmor %vm269, %vm270
        %v272 = vsel %vm271, %v264, %v268
        %v273 = vand.u32 2147483647, %v254
        %vm274 = vcmp.eq.f32.partialorder %v273, 8.507059e+37
        %v275 = vand.u32 %v254, 2147483648
        %v276 = vor.u32 1.1754944e-38, %v275
        %v277 = vsel %vm274, %v276, %v272
        %v278 = vmul.f32 %v240, %v277
        %v279 = vrcp.pop %v255
        %v280 = vmul.f32 %v255, %v279
        %v281 = vsub.f32 1.0, %v280
        %v282 = vmul.f32 %v279, %v281
        %v283 = vadd.f32 %v279, %v282
        %vm284 = vweird.f32 %v255
        %vm285 = vweird.f32 %v279
        %vm286 = vmor %vm284, %vm285
        %v287 = vsel %vm286, %v279, %v283
        %v288 = vand.u32 2147483647, %v255
        %vm289 = vcmp.eq.f32.partialorder %v288, 8.507059e+37
        %v290 = vand.u32 %v255, 2147483648
        %v291 = vor.u32 1.1754944e-38, %v290
        %v292 = vsel %vm289, %v291, %v287
        %v293 = vmul.f32 %v241, %v292
        %v294 = vadd.f32 %v278, 1.0
        %v295 = vadd.f32 %v293, 1.0
        %v296 = vmul.f32 %v252, %v294
        %v297 = vmul.f32 %v253, %v295
        %v298 = vadd.f32 %v234, %v296
        %v299 = vadd.f32 %v235, %v297
        %v300 = vrcp.pop %v298
        %v301 = vmul.f32 %v298, %v300
        %v302 = vsub.f32 1.0, %v301
        %v303 = vmul.f32 %v300, %v302
        %v304 = vadd.f32 %v300, %v303
        %vm305 = vweird.f32 %v298
        %vm306 = vweird.f32 %v300
        %vm307 = vmor %vm305, %vm306
        %v308 = vsel %vm307, %v300, %v304
        %v309 = vand.u32 2147483647, %v298
        %vm310 = vcmp.eq.f32.partialorder %v309, 8.507059e+37
        %v311 = vand.u32 %v298, 2147483648
        %v312 = vor.u32 1.1754944e-38, %v311
        %v313 = vsel %vm310, %v312, %v308
        %v314 = vmul.f32 %v262, %v313
        %v315 = vrcp.pop %v299
        %v316 = vmul.f32 %v299, %v315
        %v317 = vsub.f32 1.0, %v316
        %v318 = vmul.f32 %v315, %v317
        %v319 = vadd.f32 %v315, %v318
        %vm320 = vweird.f32 %v299
        %vm321 = vweird.f32 %v315
        %vm322 = vmor %vm320, %vm321
        %v323 = vsel %vm322, %v315, %v319
        %v324 = vand.u32 2147483647, %v299
        %vm325 = vcmp.eq.f32.partialorder %v324, 8.507059e+37
        %v326 = vand.u32 %v299, 2147483648
        %v327 = vor.u32 1.1754944e-38, %v326
        %v328 = vsel %vm325, %v327, %v323
        %v329 = vmul.f32 %v263, %v328
        %v330 = vmul.f32 %v246, %v260
        %v331 = vmul.f32 %v247, %v261
        %v332 = vmul.f32 %v234, 4.0
        %v333 = vmul.f32 %v235, 4.0
        %v334 = vmul.f32 %v250, 8.0
        %v335 = vmul.f32 %v251, 8.0
        %v336 = vadd.f32 %v332, %v334
        %v337 = vadd.f32 %v333, %v335
        %v338 = vrcp.pop %v336
        %v339 = vmul.f32 %v336, %v338
        %v340 = vsub.f32 1.0, %v339
        %v341 = vmul.f32 %v338, %v340
        %v342 = vadd.f32 %v338, %v341
        %vm343 = vweird.f32 %v336
        %vm344 = vweird.f32 %v338
        %vm345 = vmor %vm343, %vm344
        %v346 = vsel %vm345, %v338, %v342
        %v347 = vand.u32 2147483647, %v336
        %vm348 = vcmp.eq.f32.partialorder %v347, 8.507059e+37
        %v349 = vand.u32 %v336, 2147483648
        %v350 = vor.u32 1.1754944e-38, %v349
        %v351 = vsel %vm348, %v350, %v346
        %v352 = vmul.f32 %v330, %v351
        %v353 = vrcp.pop %v337
        %v354 = vmul.f32 %v337, %v353
        %v355 = vsub.f32 1.0, %v354
        %v356 = vmul.f32 %v353, %v355
        %v357 = vadd.f32 %v353, %v356
        %vm358 = vweird.f32 %v337
        %vm359 = vweird.f32 %v353
        %vm360 = vmor %vm358, %vm359
        %v361 = vsel %vm360, %v353, %v357
        %v362 = vand.u32 2147483647, %v337
        %vm363 = vcmp.eq.f32.partialorder %v362, 8.507059e+37
        %v364 = vand.u32 %v337, 2147483648
        %v365 = vor.u32 1.1754944e-38, %v364
        %v366 = vsel %vm363, %v365, %v361
        %v367 = vmul.f32 %v331, %v366
        %v368 = vmin.f32 %v314, %v352
        %v369 = vmin.f32 %v329, %v367
        %v370 = vsub.f32 %v368, %v248
        %v371 = vsub.f32 %v369, %v249
        %v372 = vrcp.pop %v242
        %v373 = vmul.f32 %v242, %v372
        %v374 = vsub.f32 1.0, %v373
        %v375 = vmul.f32 %v372, %v374
        %v376 = vadd.f32 %v372, %v375
        %vm377 = vweird.f32 %v242
        %vm378 = vweird.f32 %v372
        %vm379 = vmor %vm377, %vm378
        %v380 = vsel %vm379, %v372, %v376
        %v381 = vand.u32 2147483647, %v242
        %vm382 = vcmp.eq.f32.partialorder %v381, 8.507059e+37
        %v383 = vand.u32 %v242, 2147483648
        %v384 = vor.u32 1.1754944e-38, %v383
        %v385 = vsel %vm382, %v384, %v380
        %v386 = vmul.f32 1.0, %v385
        %v387 = vrcp.pop %v243
        %v388 = vmul.f32 %v243, %v387
        %v389 = vsub.f32 1.0, %v388
        %v390 = vmul.f32 %v387, %v389
        %v391 = vadd.f32 %v387, %v390
        %vm392 = vweird.f32 %v243
        %vm393 = vweird.f32 %v387
        %vm394 = vmor %vm392, %vm393
        %v395 = vsel %vm394, %v387, %v391
        %v396 = vand.u32 2147483647, %v243
        %vm397 = vcmp.eq.f32.partialorder %v396, 8.507059e+37
        %v398 = vand.u32 %v243, 2147483648
        %v399 = vor.u32 1.1754944e-38, %v398
        %v400 = vsel %vm397, %v399, %v395
        %v401 = vmul.f32 1.0, %v400
        %v402 = vmul.f32 %v370, %v236
        %v403 = vmul.f32 %v371, %v237
        %v404 = vmul.f32 %v402, %v386
        %v405 = vmul.f32 %v403, %v401
        %v406 = vmul.f32 %v404, 1.4
        %v407 = vmul.f32 %v405, 1.4
        %v408 = vsub.f32 %v238, %v406
        %v409 = vsub.f32 %v239, %v407
        %v410 = vmax.f32 %v408, 1e-06
        %v411 = vmax.f32 %v409, 1e-06
        %v412 = vmax.f32 %v370, 0.0
        %v413 = vmax.f32 %v371, 0.0
        %v414 = vmul.f32 %v256, %v412
        %v415 = vmul.f32 %v257, %v413
        %v416 = vmul.f32 %v414, %v236
        %v417 = vmul.f32 %v415, %v237
        %v418 = vrcp.pop %v410
        %v419 = vmul.f32 %v410, %v418
        %v420 = vsub.f32 1.0, %v419
        %v421 = vmul.f32 %v418, %v420
        %v422 = vadd.f32 %v418, %v421
        %vm423 = vweird.f32 %v410
        %vm424 = vweird.f32 %v418
        %vm425 = vmor %vm423, %vm424
        %v426 = vsel %vm425, %v418, %v422
        %v427 = vand.u32 2147483647, %v410
        %vm428 = vcmp.eq.f32.partialorder %v427, 8.507059e+37
        %v429 = vand.u32 %v410, 2147483648
        %v430 = vor.u32 1.1754944e-38, %v429
        %v431 = vsel %vm428, %v430, %v426
        %v432 = vmul.f32 %v416, %v431
        %v433 = vrcp.pop %v411
        %v434 = vmul.f32 %v411, %v433
        %v435 = vsub.f32 1.0, %v434
        %v436 = vmul.f32 %v433, %v435
        %v437 = vadd.f32 %v433, %v436
        %vm438 = vweird.f32 %v411
        %vm439 = vweird.f32 %v433
        %vm440 = vmor %vm438, %vm439
        %v441 = vsel %vm440, %v433, %v437
        %v442 = vand.u32 2147483647, %v411
        %vm443 = vcmp.eq.f32.partialorder %v442, 8.507059e+37
        %v444 = vand.u32 %v411, 2147483648
        %v445 = vor.u32 1.1754944e-38, %v444
        %v446 = vsel %vm443, %v445, %v441
        %v447 = vmul.f32 %v417, %v446
        %v448 = vadd.f32 %v432, %v258
        %v449 = vadd.f32 %v447, %v259
        %v450 = vrcp.pop %v448
        %v451 = vmul.f32 %v448, %v450
        %v452 = vsub.f32 1.0, %v451
        %v453 = vmul.f32 %v450, %v452
        %v454 = vadd.f32 %v450, %v453
        %vm455 = vweird.f32 %v448
        %vm456 = vweird.f32 %v450
        %vm457 = vmor %vm455, %vm456
        %v458 = vsel %vm457, %v450, %v454
        %v459 = vand.u32 2147483647, %v448
        %vm460 = vcmp.eq.f32.partialorder %v459, 8.507059e+37
        %v461 = vand.u32 %v448, 2147483648
        %v462 = vor.u32 1.1754944e-38, %v461
        %v463 = vsel %vm460, %v462, %v458
        %v464 = vmul.f32 1.0, %v463
        %v465 = vrcp.pop %v449
        %v466 = vmul.f32 %v449, %v465
        %v467 = vsub.f32 1.0, %v466
        %v468 = vmul.f32 %v465, %v467
        %v469 = vadd.f32 %v465, %v468
        %vm470 = vweird.f32 %v449
        %vm471 = vweird.f32 %v465
        %vm472 = vmor %vm470, %vm471
        %v473 = vsel %vm472, %v465, %v469
        %v474 = vand.u32 2147483647, %v449
        %vm475 = vcmp.eq.f32.partialorder %v474, 8.507059e+37
        %v476 = vand.u32 %v449, 2147483648
        %v477 = vor.u32 1.1754944e-38, %v476
        %v478 = vsel %vm475, %v477, %v473
        %v479 = vmul.f32 1.0, %v478
        %v480 = vsub.f32 %v234, %v238
        %v481 = vsub.f32 %v235, %v239
        %v482 = vadd.f32 %v480, %v406
        %v483 = vadd.f32 %v481, %v407
        %v484 = vmul.f32 %v402, 1.6
        %v485 = vmul.f32 %v403, 1.6
        %v486 = vmul.f32 %v484, %v464
        %v487 = vmul.f32 %v485, %v479
        %v488 = vadd.f32 %v482, %v486
        %v489 = vadd.f32 %v483, %v487
        %v490 = vmul.f32 %v238, 0.7
        %v491 = vmul.f32 %v239, 0.7
        %vm492 = vcmp.lt.f32.partialorder %v370, 0.0
        %vm493 = vcmp.lt.f32.partialorder %v371, 0.0
        %v494 = vsub.f32 %v234, %v490
        %v495 = vsub.f32 %v235, %v491
        %v496 = vsel %vm492, %v494, %v488
        %v497 = vsel %vm493, %v495, %v489
        %498 = vst [vmem:[%s230] sm:$0xff] %v496
        %499 = vst [vmem:[%s230 + $0x8] sm:$0xff] %v497
        %s500 = sand.u32 %s82, 1
        %s501 = scalar_lea.sflag [#allocation4], %s500
        %s502 = sand.u32 %s82, 1
        %s503 = smul.addr %s502, 16
        %s504 = scalar_lea.vmem [#allocation7], %s503
        // Predicated region
        $region37: #{tpu_custom_call.1} parent=27 // pred_check
          %p505 = pneg %p92
        $region38: #{tpu_custom_call.1} parent=27 // pred_check_branch
          %507 = sbr.rel (%p505) target = $region40
        $region39: #{tpu_custom_call.1} parent=27 // pred_region
          %s508 = smul.u32 2, %s22
          %510 = vsyncadd %s501, 0
          %s511 = smul.addr %s508, 8
          %s512 = scalar_lea.hbm %s2, %s511
          %s513 = sshll.u32 %s504, 4
          %s514 = int_to_ptr.vmem [resolvable:$true] %s513
          %s515 = sshll.u32 %s512, 4
          %s516 = int_to_ptr.hbm [resolvable:$true] %s515
          %521 = dma.vmem_to_hbm [thread:$0]  %s514, 256, %s516, %s501, 128, 128, 8
        $region40: #{tpu_custom_call.1} parent=27 // pred_fallthru
          _
      $region28: #{tpu_custom_call.1} parent=5 // pred_fallthru
        _
      %p522 = scmp.le.s32.totalorder 2, %s17
      // Predicated region
      $region41: #{tpu_custom_call.1} parent=5 // pred_check
        %p523 = pneg %p522
      $region42: #{tpu_custom_call.1} parent=5 // pred_check_branch
        %525 = sbr.rel (%p523) target = $region44
      $region43: #{tpu_custom_call.1} parent=5 // pred_region
        %s526 = ssub.s32 %s17, 2
        // Predicated region
        $region45: #{tpu_custom_call.1} parent=43 // pred_check
          %p527 = pneg %p98
        $region46: #{tpu_custom_call.1} parent=43 // pred_check_branch
          %529 = sbr.rel (%p527) target = $region48
        $region47: #{tpu_custom_call.1} parent=43 // pred_region
          %s530 = sand.u32 %s83, 1
          %s531 = scalar_lea.sflag [#allocation4], %s530
          %s532 = sand.u32 %s83, 1
          %s533 = smul.addr %s532, 16
          %s534 = scalar_lea.vmem [#allocation7], %s533
          %536 = dma.done %s531, 256
        $region48: #{tpu_custom_call.1} parent=43 // pred_fallthru
          _
      $region44: #{tpu_custom_call.1} parent=5 // pred_fallthru
        _
    $region6: #{tpu_custom_call.1} parent=1 // loop_footer
      %s21 = sadd.s32 1, %s17
    $region7: #{tpu_custom_call.1} parent=1 // loop_footer_branch
      %16 = sbr.rel target = $region3
    $region8: #{tpu_custom_call.1} parent=1 // loop_exit
      _
    %537 = vsyncpa [#allocation3], 1
    %s538 = scalar_lea.sflag [#allocation3], 1
    %539 = vsyncpa %s538, 1
    %540 = vsyncpa [#allocation6], 1
    %s541 = scalar_lea.sflag [#allocation6], 1
    %542 = vsyncpa %s541, 1
    %543 = vsyncpa [#allocation4], 1
    %s544 = scalar_lea.sflag [#allocation4], 1
    %545 = vsyncpa %s544, 1

</llo_original>
